<compile_context>
chip_gen: v6e
topology: v6e:2x2x1
jax: 0.10.0
libtpu: 0.0.40
codegen_flags: <defaults>
</compile_context>

<pallas_src>
import numpy as np
import jax
import jax.numpy as jnp
from jax.experimental import pallas as pl
from jax.experimental.pallas import tpu as pltpu


# --------------------------------------------------------------------------
# Host-side graph construction (mirrors IcosahedronLinear.__init__ exactly,
# but in numpy instead of torch).  Init-time only, not a kernel candidate.
# --------------------------------------------------------------------------
def make_icosahedron():
    phi = (1.0 + np.sqrt(5.0)) / 2.0
    verts = np.array(
        [
            [-1.0, phi, 0.0], [1.0, phi, 0.0], [-1.0, -phi, 0.0], [1.0, -phi, 0.0],
            [0.0, -1.0, phi], [0.0, 1.0, phi], [0.0, -1.0, -phi], [0.0, 1.0, -phi],
            [phi, 0.0, -1.0], [phi, 0.0, 1.0], [-phi, 0.0, -1.0], [-phi, 0.0, 1.0],
        ],
        dtype=np.float64,
    )
    edges = []
    n = verts.shape[0]
    for i in range(n):
        for j in range(i + 1, n):
            if abs(np.linalg.norm(verts[i] - verts[j]) - 2.0) < 1e-6:
                edges.append([i, j])
    return verts, edges


def get_neighbors(list_edges, nbr_vert):
    neighbors = [[] for _ in range(nbr_vert)]
    for v1, v2 in list_edges:
        neighbors[v1].append(v2)
        neighbors[v2].append(v1)
    return neighbors


def sort_neighbors(list_neighbors, nbr_vert):
    new_neighbors = [[] for _ in range(nbr_vert)]
    for i in range(nbr_vert):
        neighbors = list_neighbors[i].copy()
        vert = neighbors[0]
        new_neighbors[i].append(vert)
        neighbors.remove(vert)
        while len(neighbors) != 0:
            common = list(set(neighbors).intersection(list_neighbors[vert]))
            vert = common[0]
            new_neighbors[i].append(vert)
            neighbors.remove(vert)
    return new_neighbors


def sort_rotation(verts, list_neighbors, nbr_vert):
    new_neighbors = [[] for _ in range(nbr_vert)]
    for i in range(nbr_vert):
        p0 = verts[i]
        p1 = verts[list_neighbors[i][0]]
        p2 = verts[list_neighbors[i][1]]
        v1 = p1 - p0
        v2 = p2 - p1
        vn = np.cross(v1, v2)
        n = vn / np.linalg.norm(vn)
        milieu = p1 + v2 / 2.0
        v3 = milieu - p0
        cg = p0 + 2.0 * v3 / 3.0
        if np.dot(n, cg) > 1.0:
            new_neighbors[i] = list_neighbors[i]
        else:
            list_neighbors[i].reverse()
            new_neighbors[i] = list_neighbors[i]
    return new_neighbors


def get_mat_neighbors(list_neighbors, nbr_vert):
    mat = np.zeros((nbr_vert, nbr_vert * 7), dtype=np.float32)
    for index_cam in range(nbr_vert):
        mat[index_cam, index_cam * 7] = 1.0
        for index_neighbor in range(len(list_neighbors[index_cam])):
            mat[list_neighbors[index_cam][index_neighbor],
                index_cam * 7 + index_neighbor + 1] = 1.0
    return mat


# --------------------------------------------------------------------------
# Init-time algebraic fusion: fold mat_neighbors into the Linear parameters.
#   out[b, v, o] = sum_{v', f} x[b, v', f] * W_eff[(v', f), (v, o)] + bias[o]
#   W_eff[(v', f), (v, o)] = sum_k mat_neighbors[v', v*7+k] * weight[o, f*7+k]
# mat_neighbors is a fixed 0/1 buffer, so this is exact (pure re-indexing of W).
# --------------------------------------------------------------------------
def fuse_graph_into_linear(mat_neighbors, weight, bias):
    V = mat_neighbors.shape[0]
    O, FK = weight.shape
    F = FK // 7
    mn = mat_neighbors.reshape(V, V, 7)                      # [v', v, k]
    w = weight.reshape(O, F, 7)                              # [o, f, k]
    w_eff = jnp.einsum("avk,ofk->afvo", mn, w).reshape(V * F, V * O)
    bias_eff = jnp.broadcast_to(bias, (V, O)).reshape(1, V * O)
    return w_eff, bias_eff


# --------------------------------------------------------------------------
# Pallas kernel: one fused matmul + bias, tiled over rows.
# --------------------------------------------------------------------------
def _fused_matmul_bias_kernel(x_ref, w_ref, b_ref, o_ref):
    acc = jnp.dot(x_ref[...], w_ref[...], preferred_element_type=jnp.float32)
    o_ref[...] = (acc + b_ref[...]).astype(o_ref.dtype)


def _round_up(x, m):
    return ((x + m - 1) // m) * m


def fused_linear(x2d, w_eff, bias_eff, *, tile_m=512):
    """out = x2d @ w_eff + bias_eff, single pallas_call tiled over rows."""
    M, K = x2d.shape
    Kw, N = w_eff.shape
    assert Kw == K, (Kw, K)

    # Row tile: large enough for pipelining at big M, padded to a multiple of 8
    # otherwise.  Per-step VMEM (double-buffered, f32):
    #   2*(tile_m*K + K*N + tile_m*N)*4 B  ~= 1.3 MiB at tile_m=512, K=96, N=192
    # -> comfortably under the v7x 64 MiB VMEM / 32 MiB default scoped limit.
    tm = tile_m if M >= tile_m else _round_up(max(M, 1), 8)
    m_pad = _round_up(M, tm)
    if m_pad != M:
        x2d = jnp.pad(x2d, ((0, m_pad - M), (0, 0)))

    out = pl.pallas_call(
        _fused_matmul_bias_kernel,
        out_shape=jax.ShapeDtypeStruct((m_pad, N), jnp.float32),
        grid=(m_pad // tm,),
        in_specs=[
            pl.BlockSpec((tm, K), lambda i: (i, 0)),
            pl.BlockSpec((K, N), lambda i: (0, 0)),
            pl.BlockSpec((1, N), lambda i: (0, 0)),
        ],
        out_specs=pl.BlockSpec((tm, N), lambda i: (i, 0)),
        compiler_params=pltpu.CompilerParams(
            dimension_semantics=("parallel",)),
    )(x2d, w_eff, bias_eff)

    return out[:M] if m_pad != M else out


# --------------------------------------------------------------------------
# Forward pass (semantics of IcosahedronLinear.forward, using fused params)
# --------------------------------------------------------------------------
def icosahedron_linear_forward(x, w_eff, bias_eff, *, tile_m=512):
    # x: (B, V, F) float32
    B, V, F = x.shape
    N = w_eff.shape[1]
    O = N // V
    # TODO(synk): for v6e/v7x deployments, cast x2d and w_eff to bfloat16 here
    # (keep f32 accumulation via preferred_element_type) to halve HBM traffic.
    x2d = x.reshape(B, V * F)
    out = fused_linear(x2d, w_eff, bias_eff, tile_m=tile_m)
    return out.reshape(B, V, O)


# --------------------------------------------------------------------------
if __name__ == "__main__":
    # Build the icosahedron graph and neighbor matrix (buffer of the module).
    verts_np, edges = make_icosahedron()
    nbr_vert = int(np.max(np.array(edges)) + 1)                  # 12
    list_neighbors = get_neighbors(edges, nbr_vert)
    list_neighbors = sort_neighbors(list_neighbors, nbr_vert)
    list_neighbors = sort_rotation(verts_np, list_neighbors, nbr_vert)
    mat_neighbors = jnp.asarray(get_mat_neighbors(list_neighbors, nbr_vert))

    # Small shapes: batch=2, nbr_cam=12 (icosahedron verts), nbr_features=8,
    # out_channels=16.  Linear module: in_features = 8*7 = 56.
    B, V, F, O = 2, nbr_vert, 8, 16
    key = jax.random.PRNGKey(0)
    kx, kw, kb = jax.random.split(key, 3)

    x = jax.random.normal(kx, (B, V, F), dtype=jnp.float32)
    bound = 1.0 / np.sqrt(F * 7)
    weight = jax.random.uniform(kw, (O, F * 7), dtype=jnp.float32,
                                minval=-bound, maxval=bound)
    bias = jax.random.uniform(kb, (O,), dtype=jnp.float32,
                              minval=-bound, maxval=bound)

    # Init-time fusion (done once per module, outside the hot path).
    w_eff, bias_eff = fuse_graph_into_linear(mat_neighbors, weight, bias)

    out = icosahedron_linear_forward(x, w_eff, bias_eff)
    out = jax.block_until_ready(out)

    # Pure-JAX reference of the ORIGINAL two-matmul forward for a sanity check.
    x2 = jnp.transpose(x, (0, 2, 1)).reshape(B * F, V)
    ref = (x2 @ mat_neighbors).reshape(B, F, V, 7).transpose(0, 2, 1, 3)
    ref = ref.reshape(B * V, F * 7) @ weight.T + bias
    ref = ref.reshape(B, V, O)

    assert out.shape == (B, V, O)
    np.testing.assert_allclose(np.asarray(out), np.asarray(ref),
                               rtol=1e-5, atol=1e-5)
    print("KERNEL_OK")
</pallas_src>

<mosaic_0001>
module attributes {stable_mosaic.version = 11 : i64} {
  func.func @_fused_matmul_bias_kernel(%arg0: i32, %arg1: memref<8x96xf32, #tpu.memory_space<vmem>>, %arg2: memref<96x192xf32, #tpu.memory_space<vmem>>, %arg3: memref<1x192xf32, #tpu.memory_space<vmem>>, %arg4: memref<8x192xf32, #tpu.memory_space<vmem>>) attributes {dimension_semantics = [#tpu.dimension_semantics<parallel>], iteration_bounds = array<i64: 1>, scalar_prefetch = 0 : i64, scratch_operands = 0 : i64, tpu.core_type = #tpu.core_type<tc>, window_params = [{transform_indices = @transform_0, window_bounds = array<i64: 8, 96>}, {pipeline_mode = #tpu.pipeline_mode<synchronous>, transform_indices = @transform_1, window_bounds = array<i64: 96, 192>}, {pipeline_mode = #tpu.pipeline_mode<synchronous>, transform_indices = @transform_2, window_bounds = array<i64: 1, 192>}, {transform_indices = @transform_3, window_bounds = array<i64: 8, 192>}]} {
    %c0 = arith.constant 0 : index
    %c0_0 = arith.constant 0 : index
    %0 = vector.load %arg1[%c0, %c0_0] : memref<8x96xf32, #tpu.memory_space<vmem>>, vector<8x96xf32>
    %c0_1 = arith.constant 0 : index
    %c0_2 = arith.constant 0 : index
    %1 = vector.load %arg2[%c0_1, %c0_2] : memref<96x192xf32, #tpu.memory_space<vmem>>, vector<96x192xf32>
    %cst = arith.constant dense<0.000000e+00> : vector<8x192xf32>
    %2 = tpu.matmul %0, %1, %cst {dimension_numbers = #tpu.dot_dimension_numbers<[1], [0], [0], [1], [0, 0, 1, 1], [], []>} : vector<8x96xf32>, vector<96x192xf32>, vector<8x192xf32> -> vector<8x192xf32>
    %c0_3 = arith.constant 0 : index
    %c0_4 = arith.constant 0 : index
    %3 = vector.load %arg3[%c0_3, %c0_4] : memref<1x192xf32, #tpu.memory_space<vmem>>, vector<1x192xf32>
    %4 = vector.broadcast %3 : vector<1x192xf32> to vector<8x192xf32>
    %5 = arith.addf %2, %4 : vector<8x192xf32>
    %c0_5 = arith.constant 0 : index
    %c0_6 = arith.constant 0 : index
    %6 = vector.load %arg4[%c0_5, %c0_6] : memref<8x192xf32, #tpu.memory_space<vmem>>, vector<8x192xf32>
    tpu.vector_store %arg4[%c0_5, %c0_6], %5 {strides = array<i32>} : memref<8x192xf32, #tpu.memory_space<vmem>>, vector<8x192xf32>,
    return
  }
  func.func @transform_0(%arg0: i32) -> (i32, i32) {
    %c0_i32 = arith.constant 0 : i32
    %c0_i32_0 = arith.constant 0 : i32
    return %arg0, %c0_i32 : i32, i32
  }
  func.func @transform_1(%arg0: i32) -> (i32, i32) {
    %c0_i32 = arith.constant 0 : i32
    %c0_i32_0 = arith.constant 0 : i32
    %c0_i32_1 = arith.constant 0 : i32
    return %c0_i32, %c0_i32_0 : i32, i32
  }
  func.func @transform_2(%arg0: i32) -> (i32, i32) {
    %c0_i32 = arith.constant 0 : i32
    %c0_i32_0 = arith.constant 0 : i32
    %c0_i32_1 = arith.constant 0 : i32
    return %c0_i32, %c0_i32_0 : i32, i32
  }
  func.func @transform_3(%arg0: i32) -> (i32, i32) {
    %c0_i32 = arith.constant 0 : i32
    %c0_i32_0 = arith.constant 0 : i32
    return %arg0, %c0_i32 : i32, i32
  }
}

</mosaic_0001>

<llo_original>
// kernel: tpu_custom_call.1
$region0: #{tpu_custom_call.1}
  #allocation0 [shape = 'u32[]', space=smem, size = 0x4, offset = 0x4, fixed_abs, tag = 'smem constant byte address 0x4 - core index']
  #allocation1 [shape = 'u32[144,128]{1,0:T(1,128)}', space=vmem, size = 0x12000, scoped, tag = 'internal scratch']
  %s0 = inlined_call_operand.hbm [shape: f32[8,96], index: 0, kind: input, shape index: {}]
  %s1 = inlined_call_operand.hbm [shape: f32[96,192], index: 1, kind: input, shape index: {}]
  %s2 = inlined_call_operand.vmem [shape: f32[1,192], index: 2, kind: input, shape index: {}]
  %s3 = inlined_call_operand.hbm [shape: f32[8,192], index: 3, kind: output, shape index: {}]
  %s4 = sld [smem:[#allocation0]]
  $region30: #{tpu_custom_call.1} parent=0
    _
  %s6 = ssub.s32 1, %s4
  %s7 = scalar_select 0, %s6, %s4
  $region1: #{tpu_custom_call.1} parent=0
    #allocation2 [shape = 'u8[4096]{0}', space=vmem, size = 0x1000, scoped, tag = 'input window, operand 0, single buffered']
    #allocation3 [shape = 's32[1]{0}', space=sflag, size = 0x4, scoped, tag = 'scoped memory for tpu_custom_call.1']
    #allocation4 [shape = 's32[1]{0}', space=sflag, size = 0x4, scoped, tag = 'scoped memory for tpu_custom_call.1']
    #allocation5 [shape = 'u8[98304]{0}', space=vmem, size = 0x18000, scoped, tag = 'input window, operand 1, single buffered']
    #allocation6 [shape = 's32[1]{0}', space=sflag, size = 0x4, scoped, tag = 'scoped memory for tpu_custom_call.1']
    #allocation7 [shape = 'u8[8192]{0}', space=vmem, size = 0x2000, scoped, tag = 'output window, operand 0, single buffered']
    %8 = vsyncpa [#allocation3], 0
    %9 = vsyncpa [#allocation6], 0
    %10 = vsyncpa [#allocation4], 0
    // Predicated region
    $region2: #{tpu_custom_call.1} parent=1 // pred_check
      _
    $region3: #{tpu_custom_call.1} parent=1 // pred_check_branch
      %12 = sbr.rel (0) target = $region5
    $region4: #{tpu_custom_call.1} parent=1 // pred_region
      %s14 = ssub.s32 128, 128
      %15 = vsyncadd [#allocation3], %s14
      %s17 = sshll.u32 [#allocation2], 4
      %s18 = int_to_ptr.vmem [resolvable:$true] %s17
      %20 = dma.hbm_to_vmem [thread:$0]  %s0, 128, %s18, [#allocation3]
    $region5: #{tpu_custom_call.1} parent=1 // pred_fallthru
      _
    // Predicated region
    $region6: #{tpu_custom_call.1} parent=1 // pred_check
      _
    $region7: #{tpu_custom_call.1} parent=1 // pred_check_branch
      %22 = sbr.rel (0) target = $region9
    $region8: #{tpu_custom_call.1} parent=1 // pred_region
      %s24 = ssub.s32 3072, 3072
      %25 = vsyncadd [#allocation6], %s24
      %s26 = sshll.u32 [#allocation5], 4
      %s27 = int_to_ptr.vmem [resolvable:$true] %s26
      %32 = dma.hbm_to_vmem [thread:$0]  %s1, 3072, %s27, [#allocation6], 256, 256, 16
    $region9: #{tpu_custom_call.1} parent=1 // pred_fallthru
      _
    // Predicated region
    $region10: #{tpu_custom_call.1} parent=1 // pred_check
      _
    $region11: #{tpu_custom_call.1} parent=1 // pred_check_branch
      %34 = sbr.rel (0) target = $region13
    $region12: #{tpu_custom_call.1} parent=1 // pred_region
      _
    $region13: #{tpu_custom_call.1} parent=1 // pred_fallthru
      _
    // Predicated region
    $region14: #{tpu_custom_call.1} parent=1 // pred_check
      _
    $region15: #{tpu_custom_call.1} parent=1 // pred_check_branch
      %36 = sbr.rel (0) target = $region17
    $region16: #{tpu_custom_call.1} parent=1 // pred_region
      %37 = dma.done [#allocation3], 128
    $region17: #{tpu_custom_call.1} parent=1 // pred_fallthru
      _
    // Predicated region
    $region18: #{tpu_custom_call.1} parent=1 // pred_check
      _
    $region19: #{tpu_custom_call.1} parent=1 // pred_check_branch
      %39 = sbr.rel (0) target = $region21
    $region20: #{tpu_custom_call.1} parent=1 // pred_region
      %40 = dma.done [#allocation6], 3072
    $region21: #{tpu_custom_call.1} parent=1 // pred_fallthru
      _
    %v41 = vld [vmem:[#allocation2] sm:$0xff]
    %v42 = vld [vmem:[#allocation5] sm:$0xff]
    %v43 = vld [vmem:[#allocation5 + $0x8] sm:$0xff]
    %v44 = vld [vmem:[#allocation5 + $0x10] sm:$0xff]
    %v45 = vld [vmem:[#allocation5 + $0x18] sm:$0xff]
    %v46 = vld [vmem:[#allocation5 + $0x20] sm:$0xff]
    %v47 = vld [vmem:[#allocation5 + $0x28] sm:$0xff]
    %v48 = vld [vmem:[#allocation5 + $0x30] sm:$0xff]
    %v49 = vld [vmem:[#allocation5 + $0x38] sm:$0xff]
    %v50 = vld [vmem:[#allocation5 + $0x40] sm:$0xff]
    %v51 = vld [vmem:[#allocation5 + $0x48] sm:$0xff]
    %v52 = vld [vmem:[#allocation5 + $0x50] sm:$0xff]
    %v53 = vld [vmem:[#allocation5 + $0x58] sm:$0xff]
    %v54 = vld [vmem:[#allocation5 + $0x60] sm:$0xff]
    %v55 = vld [vmem:[#allocation5 + $0x68] sm:$0xff]
    %v56 = vld [vmem:[#allocation5 + $0x70] sm:$0xff]
    %v57 = vld [vmem:[#allocation5 + $0x78] sm:$0xff]
    %v58 = vld [vmem:[#allocation5 + $0x80] sm:$0xff]
    %v59 = vld [vmem:[#allocation5 + $0x88] sm:$0xff]
    %v60 = vld [vmem:[#allocation5 + $0x90] sm:$0xff]
    %v61 = vld [vmem:[#allocation5 + $0x98] sm:$0xff]
    %v62 = vld [vmem:[#allocation5 + $0xa0] sm:$0xff]
    %v63 = vld [vmem:[#allocation5 + $0xa8] sm:$0xff]
    %v64 = vld [vmem:[#allocation5 + $0xb0] sm:$0xff]
    %v65 = vld [vmem:[#allocation5 + $0xb8] sm:$0xff]
    %v66 = vld [vmem:[%s2] sm:$0x3]
    %v68 = vlaneseq
    %v69 = vshrl.u32 %v68, 7
    %v70 = vsub.s32 0, %v69
    %v71 = vrot.slane %v66, %v70
    %v72 = vlaneseq
    %v73 = vshrl.u32 %v72, 7
    %v74 = vsub.s32 1, %v73
    %v75 = vrot.slane %v66, %v74
    %vm78 = vcmask 785408
    %v80 = vsel %vm78, %v41, 0
    %82 = vmatprep.subr.mxu0 0.0
    %83 = vmatpush1.msra.mxu0 0.0
    %84 = vmatprep.subr.mxu0 0.0
    %85 = vmatpush1.msra.mxu0 0.0
    %86 = vmatprep.subr.mxu0 0.0
    %87 = vmatpush1.msra.mxu0 0.0
    %88 = vmatprep.subr.mxu0 0.0
    %89 = vmatpush1.msra.mxu0 0.0
    %90 = vmatprep.subr.mxu0 %v65
    %91 = vmatpush1.msra.mxu0 %v64
    %92 = vmatprep.subr.mxu0 %v63
    %93 = vmatpush1.msra.mxu0 %v62
    %94 = vmatprep.subr.mxu0 %v61
    %95 = vmatpush1.msra.mxu0 %v60
    %96 = vmatprep.subr.mxu0 %v59
    %97 = vmatpush1.msra.mxu0 %v58
    %98 = vmatprep.subr.mxu0 %v57
    %99 = vmatpush1.msra.mxu0 %v56
    %100 = vmatprep.subr.mxu0 %v55
    %101 = vmatpush1.msra.mxu0 %v54
    %102 = vmatprep.subr.mxu0 %v53
    %103 = vmatpush1.msra.mxu0 %v52
    %104 = vmatprep.subr.mxu0 %v51
    %105 = vmatpush1.msra.mxu0 %v50
    %106 = vmatprep.subr.mxu0 %v49
    %107 = vmatpush1.msra.mxu0 %v48
    %108 = vmatprep.subr.mxu0 %v47
    %109 = vmatpush1.msra.mxu0 %v46
    %110 = vmatprep.subr.mxu0 %v45
    %111 = vmatpush1.msra.mxu0 %v44
    %112 = vmatprep.subr.mxu0 %v43
    %113 = vmatpush1.msra.mxu0 %v42
    %114 = vmatprep.subr.mxu0 0.0
    %115 = vmatpush2.msra.mxu0 0.0
    %116 = vmatprep.subr.mxu0 0.0
    %117 = vmatpush2.msra.mxu0 0.0
    %118 = vmatprep.subr.mxu0 0.0
    %119 = vmatpush2.msra.mxu0 0.0
    %120 = vmatprep.subr.mxu0 0.0
    %121 = vmatpush2.msra.mxu0 0.0
    %122 = vmatprep.subr.mxu0 0.0
    %123 = vmatpush2.msra.mxu0 0.0
    %124 = vmatprep.subr.mxu0 0.0
    %125 = vmatpush2.msra.mxu0 0.0
    %126 = vmatprep.subr.mxu0 0.0
    %127 = vmatpush2.msra.mxu0 0.0
    %128 = vmatprep.subr.mxu0 0.0
    %129 = vmatpush2.msra.mxu0 0.0
    %130 = vmatprep.subr.mxu0 0.0
    %131 = vmatpush2.msra.mxu0 0.0
    %132 = vmatprep.subr.mxu0 0.0
    %133 = vmatpush2.msra.mxu0 0.0
    %134 = vmatprep.subr.mxu0 0.0
    %135 = vmatpush2.msra.mxu0 0.0
    %136 = vmatprep.subr.mxu0 0.0
    %137 = vmatpush2.msra.mxu0 0.0
    %138 = vmatprep.subr.mxu0 0.0
    %139 = vmatpush2.msra.mxu0 0.0
    %140 = vmatprep.subr.mxu0 0.0
    %141 = vmatpush2.msra.mxu0 0.0
    %142 = vmatprep.subr.mxu0 0.0
    %143 = vmatpush2.msra.mxu0 0.0
    %144 = vmatprep.subr.mxu0 0.0
    %145 = vmatpush2.msra.mxu0 0.0
    %146 = vmatprep.mubr.f32.mxu0 0.0
    %147 = vmatmul.mubr.f32.gmra.mxu0 %v80
    %v148 = vpop.f32.mrf.mxu0
    %v149 = vadd.f32 %v71, %v148
    %v150 = vpop.f32.mrf.mxu0
    %v151 = vadd.f32 %v75, %v150
    %152 = vdwg.mxu0
    %153 = vst [vmem:[#allocation7] sm:$0xff] %v149
    %vm154 = vcmask 523264
    %155 = vst.msk [vmem:[#allocation7 + $0x8] sm:$0xff] %vm154, %v151
    // Predicated region
    $region22: #{tpu_custom_call.1} parent=1 // pred_check
      _
    $region23: #{tpu_custom_call.1} parent=1 // pred_check_branch
      %157 = sbr.rel (0) target = $region25
    $region24: #{tpu_custom_call.1} parent=1 // pred_region
      %s159 = ssub.s32 256, 256
      %160 = vsyncadd [#allocation4], %s159
      %s162 = sshll.u32 [#allocation7], 4
      %s163 = int_to_ptr.vmem [resolvable:$true] %s162
      %165 = dma.vmem_to_hbm [thread:$0]  %s163, 256, %s3, [#allocation4]
    $region25: #{tpu_custom_call.1} parent=1 // pred_fallthru
      _
    // Predicated region
    $region26: #{tpu_custom_call.1} parent=1 // pred_check
      _
    $region27: #{tpu_custom_call.1} parent=1 // pred_check_branch
      %167 = sbr.rel (0) target = $region29
    $region28: #{tpu_custom_call.1} parent=1 // pred_region
      %168 = dma.done [#allocation4], 256
    $region29: #{tpu_custom_call.1} parent=1 // pred_fallthru
      _
    %169 = vsyncpa [#allocation3], 1
    %170 = vsyncpa [#allocation6], 1
    %171 = vsyncpa [#allocation4], 1

</llo_original>
